<compile_context>
chip_gen: v7x
topology: tpu7x:2x2x1
jax: 0.10.0
libtpu: 0.0.40
codegen_flags: <defaults>
</compile_context>

<pallas_src>
import jax
import jax.numpy as jnp
from jax.experimental import pallas as pl
from jax.experimental.pallas import tpu as pltpu


def _sigmoid_kernel(x_ref, o_ref):
    x = x_ref[...]
    # sigmoid(x) == 0.5 * (tanh(x / 2) + 1): single EUP transcendental per vreg,
    # no VPU divide. Mathematically identical to 1/(1+exp(-x)).
    o_ref[...] = 0.5 * (jnp.tanh(0.5 * x) + 1.0)


@jax.jit
def sigmoid_pallas(x_nchw: jax.Array) -> jax.Array:
    n, c, h, w = x_nchw.shape
    # H == W == 1 for this module, so this is a free metadata reshape to a
    # lane-dense 2-D slab [N, C*H*W] (last dim maps onto the 128-wide lane axis).
    x2d = x_nchw.reshape(n, c * h * w)

    out2d = pl.pallas_call(
        _sigmoid_kernel,
        out_shape=jax.ShapeDtypeStruct(x2d.shape, x2d.dtype),
        # No grid: single DMA-in / compute / DMA-out, no pipeline machinery.
        in_specs=[pl.BlockSpec(memory_space=pltpu.MemorySpace.VMEM)],
        out_specs=pl.BlockSpec(memory_space=pltpu.MemorySpace.VMEM),
    )(x2d)

    return out2d.reshape(n, c, h, w)


if __name__ == "__main__":
    key = jax.random.PRNGKey(0)
    # Matches the module's forward input: x195 ~ [1, 576, 1, 1]
    x195 = jax.random.normal(key, (1, 576, 1, 1), dtype=jnp.float32)

    y = sigmoid_pallas(x195)
    jax.block_until_ready(y)

    # Sanity check against pure-JAX reference.
    ref = jax.nn.sigmoid(x195)
    assert y.shape == (1, 576, 1, 1)
    assert y.dtype == x195.dtype
    assert jnp.allclose(y, ref, atol=1e-6, rtol=1e-6)

    print("KERNEL_OK")
</pallas_src>

<mosaic_0001>
module attributes {stable_mosaic.version = 11 : i64} {
  func.func @_sigmoid_kernel(%arg0: memref<1x576xf32, #tpu.memory_space<vmem>>, %arg1: memref<1x576xf32, #tpu.memory_space<vmem>>) attributes {dimension_semantics = [], scalar_prefetch = 0 : i64, scratch_operands = 0 : i64, tpu.core_type = #tpu.core_type<tc>} {
    %c0 = arith.constant 0 : index
    %c0_0 = arith.constant 0 : index
    %0 = vector.load %arg0[%c0, %c0_0] : memref<1x576xf32, #tpu.memory_space<vmem>>, vector<1x576xf32>
    %cst = arith.constant 5.000000e-01 : f32
    %1 = vector.broadcast %cst : f32 to vector<1x576xf32>
    %2 = arith.mulf %1, %0 : vector<1x576xf32>
    %3 = math.tanh %2 : vector<1x576xf32>
    %cst_1 = arith.constant 1.000000e+00 : f32
    %4 = vector.broadcast %cst_1 : f32 to vector<1x576xf32>
    %5 = arith.addf %3, %4 : vector<1x576xf32>
    %cst_2 = arith.constant 5.000000e-01 : f32
    %6 = vector.broadcast %cst_2 : f32 to vector<1x576xf32>
    %7 = arith.mulf %6, %5 : vector<1x576xf32>
    %c0_3 = arith.constant 0 : index
    %c0_4 = arith.constant 0 : index
    %8 = vector.load %arg1[%c0_3, %c0_4] : memref<1x576xf32, #tpu.memory_space<vmem>>, vector<1x576xf32>
    tpu.vector_store %arg1[%c0_3, %c0_4], %7 {strides = array<i32>} : memref<1x576xf32, #tpu.memory_space<vmem>>, vector<1x576xf32>,
    return
  }
}

</mosaic_0001>

<llo_original>
// kernel: sigmoid_pallas.1
$region0: #{sigmoid_pallas.1}
  #allocation0 [shape = 'u32[]', space=smem, size = 0x4, offset = 0x4, fixed_abs, tag = 'smem constant byte address 0x4 - core index']
  #allocation1 [shape = 'u32[144,128]{1,0:T(1,128)}', space=vmem, size = 0x12000, scoped, tag = 'internal scratch']
  %s0 = inlined_call_operand.hbm [shape: f32[1,576], index: 0, kind: input, shape index: {}]
  %s1 = inlined_call_operand.hbm [shape: f32[1,576], index: 1, kind: output, shape index: {}]
  %s2 = sld [smem:[#allocation0]]
  $region18: #{sigmoid_pallas.1} parent=0
    _
  %s4 = ssub.s32 1, %s2
  %s5 = scalar_select 0, %s4, %s2
  $region1: #{sigmoid_pallas.1} parent=0
    #allocation2 [shape = 'u8[2560]{0}', space=vmem, size = 0xc00, scoped, tag = 'input window, operand 0, single buffered']
    #allocation3 [shape = 's32[1]{0}', space=sflag, size = 0x4, scoped, tag = 'scoped memory for sigmoid_pallas.1']
    #allocation4 [shape = 's32[1]{0}', space=sflag, size = 0x4, scoped, tag = 'scoped memory for sigmoid_pallas.1']
    #allocation5 [shape = 'u8[2560]{0}', space=vmem, size = 0xc00, scoped, tag = 'output window, operand 0, single buffered']
    %6 = vsyncpa [#allocation3], 0
    %7 = vsyncpa [#allocation4], 0
    // Predicated region
    $region2: #{sigmoid_pallas.1} parent=1 // pred_check
      _
    $region3: #{sigmoid_pallas.1} parent=1 // pred_check_branch
      %9 = sbr.rel (0) target = $region5
    $region4: #{sigmoid_pallas.1} parent=1 // pred_region
      %s11 = ssub.s32 80, 80
      %12 = vsyncadd [#allocation3], %s11
      %s14 = sshll.u32 [#allocation2], 4
      %s15 = int_to_ptr.vmem [resolvable:$true] %s14
      %17 = dma.hbm_to_vmem [thread:$0]  %s0, 80, %s15, [#allocation3]
    $region5: #{sigmoid_pallas.1} parent=1 // pred_fallthru
      _
    // Predicated region
    $region6: #{sigmoid_pallas.1} parent=1 // pred_check
      _
    $region7: #{sigmoid_pallas.1} parent=1 // pred_check_branch
      %19 = sbr.rel (0) target = $region9
    $region8: #{sigmoid_pallas.1} parent=1 // pred_region
      %20 = dma.done [#allocation3], 80
    $region9: #{sigmoid_pallas.1} parent=1 // pred_fallthru
      _
    %v21 = vld [vmem:[#allocation2] sm:$0x1f]
    %v22 = vmul.f32 %v21, 0.5
    %v23 = vtanh.pop %v22
    %v24 = vadd.f32 %v23, 1.0
    %v25 = vmul.f32 %v24, 0.5
    %v26 = vlaneseq
    %vm27 = vcmp.ge.s32.totalorder %v26, 0
    %vm28 = vcmp.lt.s32.totalorder %v26, 576
    %vm29 = vmand %vm27, %vm28
    %30 = vst.msk [vmem:[#allocation5] sm:$0x1f] %vm29, %v25
    // Predicated region
    $region10: #{sigmoid_pallas.1} parent=1 // pred_check
      _
    $region11: #{sigmoid_pallas.1} parent=1 // pred_check_branch
      %32 = sbr.rel (0) target = $region13
    $region12: #{sigmoid_pallas.1} parent=1 // pred_region
      %s34 = ssub.s32 80, 80
      %35 = vsyncadd [#allocation4], %s34
      %s37 = sshll.u32 [#allocation5], 4
      %s38 = int_to_ptr.vmem [resolvable:$true] %s37
      %40 = dma.vmem_to_hbm [thread:$0]  %s38, 80, %s1, [#allocation4]
    $region13: #{sigmoid_pallas.1} parent=1 // pred_fallthru
      _
    // Predicated region
    $region14: #{sigmoid_pallas.1} parent=1 // pred_check
      _
    $region15: #{sigmoid_pallas.1} parent=1 // pred_check_branch
      %42 = sbr.rel (0) target = $region17
    $region16: #{sigmoid_pallas.1} parent=1 // pred_region
      %43 = dma.done [#allocation4], 80
    $region17: #{sigmoid_pallas.1} parent=1 // pred_fallthru
      _
    %44 = vsyncpa [#allocation3], 1
    %45 = vsyncpa [#allocation4], 1

</llo_original>
